<compile_context>
chip_gen: v7x
topology: tpu7x:2x2x1
jax: 0.10.0
libtpu: 0.0.40
codegen_flags: <defaults>
</compile_context>

<pallas_src>
import functools

import jax
import jax.numpy as jnp
import numpy as np
from jax.experimental import pallas as pl
from jax.experimental.pallas import tpu as pltpu

# ---- model hyper-parameters (GenericVAE defaults + small linear head) ----
ENC_DIM = 200
LATENT_DIM = 10
CAT_DIM = 10
Q_DIM = LATENT_DIM * CAT_DIM          # 100
NUM_HEADS = 2
NUM_CLASSES = 10

# ---- kernel tuning knobs (safe on v5e / v6e / v7x) ----
_W1_RESIDENT_BUDGET = 4 * 1024 * 1024    # bf16 bytes of padded W1 kept resident in VMEM
_TK_STREAM = 4096                        # K tile when W1 must be streamed
_X_TILE_BUDGET = 8 * 1024 * 1024         # budget for the double-buffered x tile
_TM_CAP = 1024                           # max batch tile
_VMEM_LIMIT = 32 * 1024 * 1024           # scoped VMEM limit (fits v5e/v6e/v7x physical)


def _round_up(n, m):
    return ((n + m - 1) // m) * m


# ----------------------------------------------------------------------------
# Kernels
# ----------------------------------------------------------------------------
def _resident_kernel(x_ref, w1_ref, b1_ref, w2_ref, b2_ref, out_ref):
    """grid=(batch_tiles,).  The whole padded W1 stays resident in VMEM."""
    enc = jnp.dot(x_ref[...].astype(jnp.bfloat16), w1_ref[...],
                  preferred_element_type=jnp.float32)
    enc = jnp.maximum(enc + b1_ref[...], 0.0)          # bias + ReLU in f32
    out_ref[...] = (jnp.dot(enc.astype(jnp.bfloat16), w2_ref[...],
                            preferred_element_type=jnp.float32) + b2_ref[...])


def _streamed_kernel(x_ref, w1_ref, b1_ref, w2_ref, b2_ref, out_ref, acc_ref):
    """grid=(batch_tiles, k_tiles).  Encoder contraction accumulated over K tiles."""
    k = pl.program_id(1)

    @pl.when(k == 0)
    def _():
        acc_ref[...] = jnp.zeros_like(acc_ref)

    acc_ref[...] += jnp.dot(x_ref[...].astype(jnp.bfloat16), w1_ref[...],
                            preferred_element_type=jnp.float32)

    @pl.when(k == pl.num_programs(1) - 1)
    def _():
        enc = jnp.maximum(acc_ref[...] + b1_ref[...], 0.0)
        out_ref[...] = (jnp.dot(enc.astype(jnp.bfloat16), w2_ref[...],
                                preferred_element_type=jnp.float32) + b2_ref[...])


# ----------------------------------------------------------------------------
# One-time parameter preparation (folds + pads + casts), hoisted out of forward
# ----------------------------------------------------------------------------
def prepare_params(params):
    """Fold mean-over-heads and fc_z into a single (enc_dim, n_cls) matmul, pad weights to
    lane/sublane-aligned shapes, cast matmul operands to bf16.  Call once and reuse."""
    w_enc, b_enc, w_z, b_z, w_heads, b_heads = params
    f_in, enc_dim = w_enc.shape
    n_cls = w_heads.shape[-1]

    # exact folds (mean over heads and fc_z are both linear)
    w_mean = jnp.mean(w_heads.astype(jnp.float32), axis=0)          # (Q_DIM, n_cls)
    b_mean = jnp.mean(b_heads.astype(jnp.float32), axis=0)          # (1, n_cls)
    w2 = w_z.astype(jnp.float32) @ w_mean                           # (enc_dim, n_cls)
    b2 = b_z.astype(jnp.float32) @ w_mean + b_mean                  # (1, n_cls)

    enc_pad = _round_up(enc_dim, 128)                               # 200 -> 256
    out_pad = _round_up(n_cls, 128)                                 # 10  -> 128

    f128 = _round_up(f_in, 128)
    if f128 * enc_pad * 2 <= _W1_RESIDENT_BUDGET:
        tk = None                      # resident-W1 fast path: no K grid axis
        f_pad = f128
    else:
        tk = _TK_STREAM                # stream W1 over K tiles
        f_pad = _round_up(f_in, tk)

    # zero padding is exact: padded rows/cols contribute 0
    w1_p = jnp.pad(w_enc.astype(jnp.bfloat16),
                   ((0, f_pad - f_in), (0, enc_pad - enc_dim)))
    b1_p = jnp.pad(b_enc.reshape(1, -1).astype(jnp.float32),
                   ((0, 0), (0, enc_pad - enc_dim)))
    w2_p = jnp.pad(w2.astype(jnp.bfloat16),
                   ((0, enc_pad - enc_dim), (0, out_pad - n_cls)))
    b2_p = jnp.pad(b2.reshape(1, -1).astype(jnp.float32),
                   ((0, 0), (0, out_pad - n_cls)))

    meta = dict(in_features=f_in, F_pad=f_pad, ENC_PAD=enc_pad,
                OUT_PAD=out_pad, n_cls=n_cls, TK=tk)
    return (w1_p, b1_p, w2_p, b2_p), meta


def _choose_batch_tiling(batch, row_bytes):
    """Batch tile (multiple of 16 for bf16 sublane packing) + padded batch size."""
    b16 = _round_up(max(batch, 1), 16)
    tm = max(16, min(_TM_CAP, ((_X_TILE_BUDGET // (2 * row_bytes)) // 16) * 16))
    if b16 >= 32:
        # keep at least two batch tiles so both v7x TensorCores get work on the parallel axis
        tm = min(tm, _round_up(-(-b16 // 2), 16))
    tm = min(tm, b16)
    b_pad = _round_up(b16, tm)
    return tm, b_pad


# ----------------------------------------------------------------------------
# Forward
# ----------------------------------------------------------------------------
def ensemble_vae_forward(x, prepared_weights, meta):
    """x: (B, C, H, W) float32.  Returns (B, n_cls) float32."""
    w1_p, b1_p, w2_p, b2_p = prepared_weights
    batch = x.shape[0]
    x_flat = x.reshape(batch, -1)                       # NCHW flattened row-major
    f_in = x_flat.shape[1]
    assert f_in == meta["in_features"], "input feature size mismatch with prepared params"

    f_pad = meta["F_pad"]
    enc_pad = meta["ENC_PAD"]
    out_pad = meta["OUT_PAD"]
    n_cls = meta["n_cls"]
    tk = meta["TK"]
    resident = tk is None

    # x dtype policy: when no padding is needed at all, feed f32 directly and cast to bf16
    # on the VPU inside the kernel (no wrapper copy).  Otherwise cast-while-pad to bf16.
    k_tile = f_pad if resident else tk
    maybe_f32 = (f_pad == f_in) and (batch % 16 == 0)
    row_bytes = k_tile * (4 if maybe_f32 else 2)
    tm, b_pad = _choose_batch_tiling(batch, row_bytes)
    use_f32_x = maybe_f32 and (b_pad == batch)

    if use_f32_x:
        x_p = x_flat
    else:
        x_p = jnp.pad(x_flat.astype(jnp.bfloat16),
                      ((0, b_pad - batch), (0, f_pad - f_in)))

    n_btiles = b_pad // tm
    w1_reads = 1 if resident else n_btiles              # W1 re-streamed once per batch tile
    cost = pl.CostEstimate(
        flops=2 * b_pad * f_pad * enc_pad + 2 * b_pad * enc_pad * out_pad,
        transcendentals=0,
        bytes_accessed=(x_p.size * x_p.dtype.itemsize
                        + w1_p.size * 2 * w1_reads
                        + w2_p.size * 2 + b1_p.size * 4 + b2_p.size * 4
                        + b_pad * out_pad * 4),
    )

    if resident:
        grid = (n_btiles,)
        in_specs = [
            pl.BlockSpec((tm, f_pad), lambda i: (i, 0)),            # x tile
            pl.BlockSpec((f_pad, enc_pad), lambda i: (0, 0)),       # W1, fetched once
            pl.BlockSpec((1, enc_pad), lambda i: (0, 0)),           # b1
            pl.BlockSpec((enc_pad, out_pad), lambda i: (0, 0)),     # folded W2
            pl.BlockSpec((1, out_pad), lambda i: (0, 0)),           # folded b2
        ]
        out_specs = pl.BlockSpec((tm, out_pad), lambda i: (i, 0))
        scratch_shapes = []
        kernel = _resident_kernel
        dims = ("parallel",)
    else:
        grid = (n_btiles, f_pad // tk)
        in_specs = [
            pl.BlockSpec((tm, tk), lambda i, k: (i, k)),            # x tile
            pl.BlockSpec((tk, enc_pad), lambda i, k: (k, 0)),       # W1 tile (streamed over K)
            pl.BlockSpec((1, enc_pad), lambda i, k: (0, 0)),        # b1
            pl.BlockSpec((enc_pad, out_pad), lambda i, k: (0, 0)),  # folded W2
            pl.BlockSpec((1, out_pad), lambda i, k: (0, 0)),        # folded b2
        ]
        out_specs = pl.BlockSpec((tm, out_pad), lambda i, k: (i, 0))
        scratch_shapes = [pltpu.VMEM((tm, enc_pad), jnp.float32)]   # encoder accumulator
        kernel = _streamed_kernel
        dims = ("parallel", "arbitrary")

    out = pl.pallas_call(
        kernel,
        out_shape=jax.ShapeDtypeStruct((b_pad, out_pad), jnp.float32),
        grid_spec=pltpu.PrefetchScalarGridSpec(
            num_scalar_prefetch=0,
            grid=grid,
            in_specs=in_specs,
            out_specs=out_specs,
            scratch_shapes=scratch_shapes,
        ),
        compiler_params=pltpu.CompilerParams(
            dimension_semantics=dims,
            vmem_limit_bytes=_VMEM_LIMIT,
        ),
        cost_estimate=cost,
    )(x_p, w1_p, b1_p, w2_p, b2_p)

    return out[:batch, :n_cls]


# ----------------------------------------------------------------------------
# Parameter init + module-faithful reference
# ----------------------------------------------------------------------------
def init_params(key, in_features):
    ks = jax.random.split(key, 6)
    scale = 0.02
    w_enc = scale * jax.random.normal(ks[0], (in_features, ENC_DIM), jnp.float32)
    b_enc = scale * jax.random.normal(ks[1], (1, ENC_DIM), jnp.float32)
    w_z = scale * jax.random.normal(ks[2], (ENC_DIM, Q_DIM), jnp.float32)
    b_z = scale * jax.random.normal(ks[3], (1, Q_DIM), jnp.float32)
    w_heads = scale * jax.random.normal(ks[4], (NUM_HEADS, Q_DIM, NUM_CLASSES), jnp.float32)
    b_heads = scale * jax.random.normal(ks[5], (NUM_HEADS, 1, NUM_CLASSES), jnp.float32)
    return (w_enc, b_enc, w_z, b_z, w_heads, b_heads)


def reference_forward(x, params):
    """Module-faithful f32 reference: encoder -> fc_z -> per-head Linear -> mean over heads."""
    w_enc, b_enc, w_z, b_z, w_heads, b_heads = params
    x_flat = x.reshape(x.shape[0], -1)
    enc = jnp.maximum(x_flat @ w_enc + b_enc, 0.0)
    q = enc @ w_z + b_z
    ys = jnp.stack([q @ w_heads[h] + b_heads[h] for h in range(w_heads.shape[0])], axis=0)
    return jnp.mean(ys, axis=0)


if __name__ == "__main__":
    key = jax.random.PRNGKey(0)
    k_x, k_p = jax.random.split(key)

    B, C, H, W = 2, 4, 16, 16                    # small NCHW input
    x = jax.random.normal(k_x, (B, C, H, W), jnp.float32)
    params = init_params(k_p, C * H * W)

    prepared, meta = prepare_params(params)      # one-time folds / pads / bf16 casts
    fwd = jax.jit(functools.partial(ensemble_vae_forward, meta=meta))

    out = jax.block_until_ready(fwd(x, prepared))

    ref = reference_forward(x, params)
    # kernel uses bf16 matmul operands (f32 accumulation) -> lenient tolerance vs f32 ref
    np.testing.assert_allclose(np.asarray(out), np.asarray(ref), rtol=5e-2, atol=2e-3)

    print("KERNEL_OK")
</pallas_src>

<mosaic_0001>
module attributes {stable_mosaic.version = 11 : i64} {
  func.func @_resident_kernel(%arg0: i32, %arg1: memref<16x1024xbf16, #tpu.memory_space<vmem>>, %arg2: memref<1024x256xbf16, #tpu.memory_space<vmem>>, %arg3: memref<1x256xf32, #tpu.memory_space<vmem>>, %arg4: memref<256x128xbf16, #tpu.memory_space<vmem>>, %arg5: memref<1x128xf32, #tpu.memory_space<vmem>>, %arg6: memref<16x128xf32, #tpu.memory_space<vmem>>) attributes {dimension_semantics = [#tpu.dimension_semantics<parallel>], iteration_bounds = array<i64: 1>, scalar_prefetch = 0 : i64, scratch_operands = 0 : i64, tpu.core_type = #tpu.core_type<tc>, window_params = [{transform_indices = @transform_0, window_bounds = array<i64: 16, 1024>}, {pipeline_mode = #tpu.pipeline_mode<synchronous>, transform_indices = @transform_1, window_bounds = array<i64: 1024, 256>}, {pipeline_mode = #tpu.pipeline_mode<synchronous>, transform_indices = @transform_2, window_bounds = array<i64: 1, 256>}, {pipeline_mode = #tpu.pipeline_mode<synchronous>, transform_indices = @transform_3, window_bounds = array<i64: 256, 128>}, {pipeline_mode = #tpu.pipeline_mode<synchronous>, transform_indices = @transform_4, window_bounds = array<i64: 1, 128>}, {transform_indices = @transform_5, window_bounds = array<i64: 16, 128>}]} {
    %c0 = arith.constant 0 : index
    %c0_0 = arith.constant 0 : index
    %0 = vector.load %arg1[%c0, %c0_0] : memref<16x1024xbf16, #tpu.memory_space<vmem>>, vector<16x1024xbf16>
    %c0_1 = arith.constant 0 : index
    %c0_2 = arith.constant 0 : index
    %1 = vector.load %arg2[%c0_1, %c0_2] : memref<1024x256xbf16, #tpu.memory_space<vmem>>, vector<1024x256xbf16>
    %cst = arith.constant dense<0.000000e+00> : vector<16x256xf32>
    %2 = tpu.matmul %0, %1, %cst {dimension_numbers = #tpu.dot_dimension_numbers<[1], [0], [0], [1], [0, 0, 1, 1], [], []>} : vector<16x1024xbf16>, vector<1024x256xbf16>, vector<16x256xf32> -> vector<16x256xf32>
    %c0_3 = arith.constant 0 : index
    %c0_4 = arith.constant 0 : index
    %3 = vector.load %arg3[%c0_3, %c0_4] : memref<1x256xf32, #tpu.memory_space<vmem>>, vector<1x256xf32>
    %4 = vector.broadcast %3 : vector<1x256xf32> to vector<16x256xf32>
    %5 = arith.addf %2, %4 : vector<16x256xf32>
    %cst_5 = arith.constant 0.000000e+00 : f32
    %6 = vector.broadcast %cst_5 : f32 to vector<16x256xf32>
    %7 = arith.maximumf %5, %6 : vector<16x256xf32>
    %8 = arith.truncf %7 : vector<16x256xf32> to vector<16x256xbf16>
    %c0_6 = arith.constant 0 : index
    %c0_7 = arith.constant 0 : index
    %9 = vector.load %arg4[%c0_6, %c0_7] : memref<256x128xbf16, #tpu.memory_space<vmem>>, vector<256x128xbf16>
    %cst_8 = arith.constant dense<0.000000e+00> : vector<16x128xf32>
    %10 = tpu.matmul %8, %9, %cst_8 {dimension_numbers = #tpu.dot_dimension_numbers<[1], [0], [0], [1], [0, 0, 1, 1], [], []>} : vector<16x256xbf16>, vector<256x128xbf16>, vector<16x128xf32> -> vector<16x128xf32>
    %c0_9 = arith.constant 0 : index
    %c0_10 = arith.constant 0 : index
    %11 = vector.load %arg5[%c0_9, %c0_10] : memref<1x128xf32, #tpu.memory_space<vmem>>, vector<1x128xf32>
    %12 = vector.broadcast %11 : vector<1x128xf32> to vector<16x128xf32>
    %13 = arith.addf %10, %12 : vector<16x128xf32>
    %c0_11 = arith.constant 0 : index
    %c0_12 = arith.constant 0 : index
    %14 = vector.load %arg6[%c0_11, %c0_12] : memref<16x128xf32, #tpu.memory_space<vmem>>, vector<16x128xf32>
    tpu.vector_store %arg6[%c0_11, %c0_12], %13 {strides = array<i32>} : memref<16x128xf32, #tpu.memory_space<vmem>>, vector<16x128xf32>,
    return
  }
  func.func @transform_0(%arg0: i32) -> (i32, i32) {
    %c0_i32 = arith.constant 0 : i32
    %c0_i32_0 = arith.constant 0 : i32
    return %arg0, %c0_i32 : i32, i32
  }
  func.func @transform_1(%arg0: i32) -> (i32, i32) {
    %c0_i32 = arith.constant 0 : i32
    %c0_i32_0 = arith.constant 0 : i32
    %c0_i32_1 = arith.constant 0 : i32
    return %c0_i32, %c0_i32_0 : i32, i32
  }
  func.func @transform_2(%arg0: i32) -> (i32, i32) {
    %c0_i32 = arith.constant 0 : i32
    %c0_i32_0 = arith.constant 0 : i32
    %c0_i32_1 = arith.constant 0 : i32
    return %c0_i32, %c0_i32_0 : i32, i32
  }
  func.func @transform_3(%arg0: i32) -> (i32, i32) {
    %c0_i32 = arith.constant 0 : i32
    %c0_i32_0 = arith.constant 0 : i32
    %c0_i32_1 = arith.constant 0 : i32
    return %c0_i32, %c0_i32_0 : i32, i32
  }
  func.func @transform_4(%arg0: i32) -> (i32, i32) {
    %c0_i32 = arith.constant 0 : i32
    %c0_i32_0 = arith.constant 0 : i32
    %c0_i32_1 = arith.constant 0 : i32
    return %c0_i32, %c0_i32_0 : i32, i32
  }
  func.func @transform_5(%arg0: i32) -> (i32, i32) {
    %c0_i32 = arith.constant 0 : i32
    %c0_i32_0 = arith.constant 0 : i32
    return %arg0, %c0_i32 : i32, i32
  }
}

</mosaic_0001>

<llo_original>
// kernel: ensemble_vae_forward.1
$region0: #{ensemble_vae_forward.1}
  #allocation0 [shape = 'u32[]', space=smem, size = 0x4, offset = 0x4, fixed_abs, tag = 'smem constant byte address 0x4 - core index']
  #allocation1 [shape = 'u32[144,128]{1,0:T(1,128)}', space=vmem, size = 0x12000, scoped, tag = 'internal scratch']
  %s0 = inlined_call_operand.vmem [shape: bf16[16,1024], index: 0, kind: input, shape index: {}]
  %s1 = inlined_call_operand.hbm [shape: bf16[1024,256], index: 1, kind: input, shape index: {}]
  %s2 = inlined_call_operand.vmem [shape: f32[1,256], index: 2, kind: input, shape index: {}]
  %s3 = inlined_call_operand.vmem [shape: bf16[256,128], index: 3, kind: input, shape index: {}]
  %s4 = inlined_call_operand.vmem [shape: f32[1,128], index: 4, kind: input, shape index: {}]
  %s5 = inlined_call_operand.vmem [shape: f32[16,128], index: 5, kind: output, shape index: {}]
  %s6 = sld [smem:[#allocation0]]
  $region34: #{ensemble_vae_forward.1} parent=0
    _
  %s8 = ssub.s32 1, %s6
  %s9 = scalar_select 0, %s8, %s6
  $region1: #{ensemble_vae_forward.1} parent=0
    #allocation2 [shape = 'u8[524288]{0}', space=vmem, size = 0x80000, scoped, tag = 'input window, operand 1, single buffered']
    #allocation3 [shape = 's32[1]{0}', space=sflag, size = 0x4, scoped, tag = 'scoped memory for ensemble_vae_forward.1']
    %10 = vsyncpa [#allocation3], 0
    // Predicated region
    $region2: #{ensemble_vae_forward.1} parent=1 // pred_check
      _
    $region3: #{ensemble_vae_forward.1} parent=1 // pred_check_branch
      %12 = sbr.rel (0) target = $region5
    $region4: #{ensemble_vae_forward.1} parent=1 // pred_region
      _
    $region5: #{ensemble_vae_forward.1} parent=1 // pred_fallthru
      _
    // Predicated region
    $region6: #{ensemble_vae_forward.1} parent=1 // pred_check
      _
    $region7: #{ensemble_vae_forward.1} parent=1 // pred_check_branch
      %14 = sbr.rel (0) target = $region9
    $region8: #{ensemble_vae_forward.1} parent=1 // pred_region
      %s16 = ssub.s32 16384, 16384
      %17 = vsyncadd [#allocation3], %s16
      %s18 = sshll.u32 [#allocation2], 4
      %s19 = int_to_ptr.vmem [resolvable:$true] %s18
      %24 = dma.hbm_to_vmem [thread:$0]  %s1, 16384, %s19, [#allocation3], 128, 128, 8
    $region9: #{ensemble_vae_forward.1} parent=1 // pred_fallthru
      _
    // Predicated region
    $region10: #{ensemble_vae_forward.1} parent=1 // pred_check
      _
    $region11: #{ensemble_vae_forward.1} parent=1 // pred_check_branch
      %26 = sbr.rel (0) target = $region13
    $region12: #{ensemble_vae_forward.1} parent=1 // pred_region
      _
    $region13: #{ensemble_vae_forward.1} parent=1 // pred_fallthru
      _
    // Predicated region
    $region14: #{ensemble_vae_forward.1} parent=1 // pred_check
      _
    $region15: #{ensemble_vae_forward.1} parent=1 // pred_check_branch
      %28 = sbr.rel (0) target = $region17
    $region16: #{ensemble_vae_forward.1} parent=1 // pred_region
      _
    $region17: #{ensemble_vae_forward.1} parent=1 // pred_fallthru
      _
    // Predicated region
    $region18: #{ensemble_vae_forward.1} parent=1 // pred_check
      _
    $region19: #{ensemble_vae_forward.1} parent=1 // pred_check_branch
      %30 = sbr.rel (0) target = $region21
    $region20: #{ensemble_vae_forward.1} parent=1 // pred_region
      _
    $region21: #{ensemble_vae_forward.1} parent=1 // pred_fallthru
      _
    // Predicated region
    $region22: #{ensemble_vae_forward.1} parent=1 // pred_check
      _
    $region23: #{ensemble_vae_forward.1} parent=1 // pred_check_branch
      %32 = sbr.rel (0) target = $region25
    $region24: #{ensemble_vae_forward.1} parent=1 // pred_region
      %33 = dma.done [#allocation3], 16384
    $region25: #{ensemble_vae_forward.1} parent=1 // pred_fallthru
      _
    %v35 = vld [vmem:[%s0] sm:$0xff]
    %v36 = vld [vmem:[%s0 + $0x8] sm:$0xff]
    %v37 = vld [vmem:[%s0 + $0x10] sm:$0xff]
    %v38 = vld [vmem:[%s0 + $0x18] sm:$0xff]
    %v39 = vld [vmem:[%s0 + $0x20] sm:$0xff]
    %v40 = vld [vmem:[%s0 + $0x28] sm:$0xff]
    %v41 = vld [vmem:[%s0 + $0x30] sm:$0xff]
    %v42 = vld [vmem:[%s0 + $0x38] sm:$0xff]
    %v43 = vld [vmem:[#allocation2] sm:$0xff]
    %v44 = vld [vmem:[#allocation2 + $0x8] sm:$0xff]
    %v45 = vld [vmem:[#allocation2 + $0x10] sm:$0xff]
    %v46 = vld [vmem:[#allocation2 + $0x18] sm:$0xff]
    %v47 = vld [vmem:[#allocation2 + $0x20] sm:$0xff]
    %v48 = vld [vmem:[#allocation2 + $0x28] sm:$0xff]
    %v49 = vld [vmem:[#allocation2 + $0x30] sm:$0xff]
    %v50 = vld [vmem:[#allocation2 + $0x38] sm:$0xff]
    %v51 = vld [vmem:[#allocation2 + $0x40] sm:$0xff]
    %v52 = vld [vmem:[#allocation2 + $0x48] sm:$0xff]
    %v53 = vld [vmem:[#allocation2 + $0x50] sm:$0xff]
    %v54 = vld [vmem:[#allocation2 + $0x58] sm:$0xff]
    %v55 = vld [vmem:[#allocation2 + $0x60] sm:$0xff]
    %v56 = vld [vmem:[#allocation2 + $0x68] sm:$0xff]
    %v57 = vld [vmem:[#allocation2 + $0x70] sm:$0xff]
    %v58 = vld [vmem:[#allocation2 + $0x78] sm:$0xff]
    %v59 = vld [vmem:[#allocation2 + $0x80] sm:$0xff]
    %v60 = vld [vmem:[#allocation2 + $0x88] sm:$0xff]
    %v61 = vld [vmem:[#allocation2 + $0x90] sm:$0xff]
    %v62 = vld [vmem:[#allocation2 + $0x98] sm:$0xff]
    %v63 = vld [vmem:[#allocation2 + $0xa0] sm:$0xff]
    %v64 = vld [vmem:[#allocation2 + $0xa8] sm:$0xff]
    %v65 = vld [vmem:[#allocation2 + $0xb0] sm:$0xff]
    %v66 = vld [vmem:[#allocation2 + $0xb8] sm:$0xff]
    %v67 = vld [vmem:[#allocation2 + $0xc0] sm:$0xff]
    %v68 = vld [vmem:[#allocation2 + $0xc8] sm:$0xff]
    %v69 = vld [vmem:[#allocation2 + $0xd0] sm:$0xff]
    %v70 = vld [vmem:[#allocation2 + $0xd8] sm:$0xff]
    %v71 = vld [vmem:[#allocation2 + $0xe0] sm:$0xff]
    %v72 = vld [vmem:[#allocation2 + $0xe8] sm:$0xff]
    %v73 = vld [vmem:[#allocation2 + $0xf0] sm:$0xff]
    %v74 = vld [vmem:[#allocation2 + $0xf8] sm:$0xff]
    %v75 = vld [vmem:[#allocation2 + $0x100] sm:$0xff]
    %v76 = vld [vmem:[#allocation2 + $0x108] sm:$0xff]
    %v77 = vld [vmem:[#allocation2 + $0x110] sm:$0xff]
    %v78 = vld [vmem:[#allocation2 + $0x118] sm:$0xff]
    %v79 = vld [vmem:[#allocation2 + $0x120] sm:$0xff]
    %v80 = vld [vmem:[#allocation2 + $0x128] sm:$0xff]
    %v81 = vld [vmem:[#allocation2 + $0x130] sm:$0xff]
    %v82 = vld [vmem:[#allocation2 + $0x138] sm:$0xff]
    %v83 = vld [vmem:[#allocation2 + $0x140] sm:$0xff]
    %v84 = vld [vmem:[#allocation2 + $0x148] sm:$0xff]
    %v85 = vld [vmem:[#allocation2 + $0x150] sm:$0xff]
    %v86 = vld [vmem:[#allocation2 + $0x158] sm:$0xff]
    %v87 = vld [vmem:[#allocation2 + $0x160] sm:$0xff]
    %v88 = vld [vmem:[#allocation2 + $0x168] sm:$0xff]
    %v89 = vld [vmem:[#allocation2 + $0x170] sm:$0xff]
    %v90 = vld [vmem:[#allocation2 + $0x178] sm:$0xff]
    %v91 = vld [vmem:[#allocation2 + $0x180] sm:$0xff]
    %v92 = vld [vmem:[#allocation2 + $0x188] sm:$0xff]
    %v93 = vld [vmem:[#allocation2 + $0x190] sm:$0xff]
    %v94 = vld [vmem:[#allocation2 + $0x198] sm:$0xff]
    %v95 = vld [vmem:[#allocation2 + $0x1a0] sm:$0xff]
    %v96 = vld [vmem:[#allocation2 + $0x1a8] sm:$0xff]
    %v97 = vld [vmem:[#allocation2 + $0x1b0] sm:$0xff]
    %v98 = vld [vmem:[#allocation2 + $0x1b8] sm:$0xff]
    %v99 = vld [vmem:[#allocation2 + $0x1c0] sm:$0xff]
    %v100 = vld [vmem:[#allocation2 + $0x1c8] sm:$0xff]
    %v101 = vld [vmem:[#allocation2 + $0x1d0] sm:$0xff]
    %v102 = vld [vmem:[#allocation2 + $0x1d8] sm:$0xff]
    %v103 = vld [vmem:[#allocation2 + $0x1e0] sm:$0xff]
    %v104 = vld [vmem:[#allocation2 + $0x1e8] sm:$0xff]
    %v105 = vld [vmem:[#allocation2 + $0x1f0] sm:$0xff]
    %v106 = vld [vmem:[#allocation2 + $0x1f8] sm:$0xff]
    %v107 = vld [vmem:[#allocation2 + $0x200] sm:$0xff]
    %v108 = vld [vmem:[#allocation2 + $0x208] sm:$0xff]
    %v109 = vld [vmem:[#allocation2 + $0x210] sm:$0xff]
    %v110 = vld [vmem:[#allocation2 + $0x218] sm:$0xff]
    %v111 = vld [vmem:[#allocation2 + $0x220] sm:$0xff]
    %v112 = vld [vmem:[#allocation2 + $0x228] sm:$0xff]
    %v113 = vld [vmem:[#allocation2 + $0x230] sm:$0xff]
    %v114 = vld [vmem:[#allocation2 + $0x238] sm:$0xff]
    %v115 = vld [vmem:[#allocation2 + $0x240] sm:$0xff]
    %v116 = vld [vmem:[#allocation2 + $0x248] sm:$0xff]
    %v117 = vld [vmem:[#allocation2 + $0x250] sm:$0xff]
    %v118 = vld [vmem:[#allocation2 + $0x258] sm:$0xff]
    %v119 = vld [vmem:[#allocation2 + $0x260] sm:$0xff]
    %v120 = vld [vmem:[#allocation2 + $0x268] sm:$0xff]
    %v121 = vld [vmem:[#allocation2 + $0x270] sm:$0xff]
    %v122 = vld [vmem:[#allocation2 + $0x278] sm:$0xff]
    %v123 = vld [vmem:[#allocation2 + $0x280] sm:$0xff]
    %v124 = vld [vmem:[#allocation2 + $0x288] sm:$0xff]
    %v125 = vld [vmem:[#allocation2 + $0x290] sm:$0xff]
    %v126 = vld [vmem:[#allocation2 + $0x298] sm:$0xff]
    %v127 = vld [vmem:[#allocation2 + $0x2a0] sm:$0xff]
    %v128 = vld [vmem:[#allocation2 + $0x2a8] sm:$0xff]
    %v129 = vld [vmem:[#allocation2 + $0x2b0] sm:$0xff]
    %v130 = vld [vmem:[#allocation2 + $0x2b8] sm:$0xff]
    %v131 = vld [vmem:[#allocation2 + $0x2c0] sm:$0xff]
    %v132 = vld [vmem:[#allocation2 + $0x2c8] sm:$0xff]
    %v133 = vld [vmem:[#allocation2 + $0x2d0] sm:$0xff]
    %v134 = vld [vmem:[#allocation2 + $0x2d8] sm:$0xff]
    %v135 = vld [vmem:[#allocation2 + $0x2e0] sm:$0xff]
    %v136 = vld [vmem:[#allocation2 + $0x2e8] sm:$0xff]
    %v137 = vld [vmem:[#allocation2 + $0x2f0] sm:$0xff]
    %v138 = vld [vmem:[#allocation2 + $0x2f8] sm:$0xff]
    %v139 = vld [vmem:[#allocation2 + $0x300] sm:$0xff]
    %v140 = vld [vmem:[#allocation2 + $0x308] sm:$0xff]
    %v141 = vld [vmem:[#allocation2 + $0x310] sm:$0xff]
    %v142 = vld [vmem:[#allocation2 + $0x318] sm:$0xff]
    %v143 = vld [vmem:[#allocation2 + $0x320] sm:$0xff]
    %v144 = vld [vmem:[#allocation2 + $0x328] sm:$0xff]
    %v145 = vld [vmem:[#allocation2 + $0x330] sm:$0xff]
    %v146 = vld [vmem:[#allocation2 + $0x338] sm:$0xff]
    %v147 = vld [vmem:[#allocation2 + $0x340] sm:$0xff]
    %v148 = vld [vmem:[#allocation2 + $0x348] sm:$0xff]
    %v149 = vld [vmem:[#allocation2 + $0x350] sm:$0xff]
    %v150 = vld [vmem:[#allocation2 + $0x358] sm:$0xff]
    %v151 = vld [vmem:[#allocation2 + $0x360] sm:$0xff]
    %v152 = vld [vmem:[#allocation2 + $0x368] sm:$0xff]
    %v153 = vld [vmem:[#allocation2 + $0x370] sm:$0xff]
    %v154 = vld [vmem:[#allocation2 + $0x378] sm:$0xff]
    %v155 = vld [vmem:[#allocation2 + $0x380] sm:$0xff]
    %v156 = vld [vmem:[#allocation2 + $0x388] sm:$0xff]
    %v157 = vld [vmem:[#allocation2 + $0x390] sm:$0xff]
    %v158 = vld [vmem:[#allocation2 + $0x398] sm:$0xff]
    %v159 = vld [vmem:[#allocation2 + $0x3a0] sm:$0xff]
    %v160 = vld [vmem:[#allocation2 + $0x3a8] sm:$0xff]
    %v161 = vld [vmem:[#allocation2 + $0x3b0] sm:$0xff]
    %v162 = vld [vmem:[#allocation2 + $0x3b8] sm:$0xff]
    %v163 = vld [vmem:[#allocation2 + $0x3c0] sm:$0xff]
    %v164 = vld [vmem:[#allocation2 + $0x3c8] sm:$0xff]
    %v165 = vld [vmem:[#allocation2 + $0x3d0] sm:$0xff]
    %v166 = vld [vmem:[#allocation2 + $0x3d8] sm:$0xff]
    %v167 = vld [vmem:[#allocation2 + $0x3e0] sm:$0xff]
    %v168 = vld [vmem:[#allocation2 + $0x3e8] sm:$0xff]
    %v169 = vld [vmem:[#allocation2 + $0x3f0] sm:$0xff]
    %v170 = vld [vmem:[#allocation2 + $0x3f8] sm:$0xff]
    %v171 = vld [vmem:[%s2] sm:$0x3]
    %v173 = vlaneseq
    %v174 = vshrl.u32 %v173, 7
    %v175 = vsub.s32 0, %v174
    %v176 = vrot.slane %v171, %v175
    %v177 = vlaneseq
    %v178 = vshrl.u32 %v177, 7
    %v179 = vsub.s32 1, %v178
    %v180 = vrot.slane %v171, %v179
    %v191 = vunpack.c.l.b16 %v35
    %v192 = vunpack.c.h.b16 %v35
    %v193 = vunpack.c.l.b16 %v36
    %v194 = vunpack.c.h.b16 %v36
    %v195 = vunpack.c.l.b16 %v37
    %v196 = vunpack.c.h.b16 %v37
    %v197 = vunpack.c.l.b16 %v38
    %v198 = vunpack.c.h.b16 %v38
    %v199 = vunpack.c.l.b16 %v39
    %v200 = vunpack.c.h.b16 %v39
    %v201 = vunpack.c.l.b16 %v40
    %v202 = vunpack.c.h.b16 %v40
    %v203 = vunpack.c.l.b16 %v41
    %v204 = vunpack.c.h.b16 %v41
    %v205 = vunpack.c.l.b16 %v42
    %v206 = vunpack.c.h.b16 %v42
    %v207 = vpack.c.b16 %v199, %v191
    %v208 = vpack.c.b16 %v200, %v192
    %v209 = vpack.c.b16 %v201, %v193
    %v210 = vpack.c.b16 %v202, %v194
    %v211 = vpack.c.b16 %v203, %v195
    %v212 = vpack.c.b16 %v204, %v196
    %v213 = vpack.c.b16 %v205, %v197
    %v214 = vpack.c.b16 %v206, %v198
    %v351 = vunpack.c.l.b16 %v43
    %v352 = vunpack.c.h.b16 %v43
    %v353 = vunpack.c.l.b16 %v44
    %v354 = vunpack.c.h.b16 %v44
    %v355 = vunpack.c.l.b16 %v45
    %v356 = vunpack.c.h.b16 %v45
    %v357 = vunpack.c.l.b16 %v46
    %v358 = vunpack.c.h.b16 %v46
    %v359 = vunpack.c.l.b16 %v47
    %v360 = vunpack.c.h.b16 %v47
    %v361 = vunpack.c.l.b16 %v48
    %v362 = vunpack.c.h.b16 %v48
    %v363 = vunpack.c.l.b16 %v49
    %v364 = vunpack.c.h.b16 %v49
    %v365 = vunpack.c.l.b16 %v50
    %v366 = vunpack.c.h.b16 %v50
    %v367 = vunpack.c.l.b16 %v51
    %v368 = vunpack.c.h.b16 %v51
    %v369 = vunpack.c.l.b16 %v52
    %v370 = vunpack.c.h.b16 %v52
    %v371 = vunpack.c.l.b16 %v53
    %v372 = vunpack.c.h.b16 %v53
    %v373 = vunpack.c.l.b16 %v54
    %v374 = vunpack.c.h.b16 %v54
    %v375 = vunpack.c.l.b16 %v55
    %v376 = vunpack.c.h.b16 %v55
    %v377 = vunpack.c.l.b16 %v56
    %v378 = vunpack.c.h.b16 %v56
    %v379 = vunpack.c.l.b16 %v57
    %v380 = vunpack.c.h.b16 %v57
    %v381 = vunpack.c.l.b16 %v58
    %v382 = vunpack.c.h.b16 %v58
    %v383 = vunpack.c.l.b16 %v59
    %v384 = vunpack.c.h.b16 %v59
    %v385 = vunpack.c.l.b16 %v60
    %v386 = vunpack.c.h.b16 %v60
    %v387 = vunpack.c.l.b16 %v61
    %v388 = vunpack.c.h.b16 %v61
    %v389 = vunpack.c.l.b16 %v62
    %v390 = vunpack.c.h.b16 %v62
    %v391 = vunpack.c.l.b16 %v63
    %v392 = vunpack.c.h.b16 %v63
    %v393 = vunpack.c.l.b16 %v64
    %v394 = vunpack.c.h.b16 %v64
    %v395 = vunpack.c.l.b16 %v65
    %v396 = vunpack.c.h.b16 %v65
    %v397 = vunpack.c.l.b16 %v66
    %v398 = vunpack.c.h.b16 %v66
    %v399 = vunpack.c.l.b16 %v67
    %v400 = vunpack.c.h.b16 %v67
    %v401 = vunpack.c.l.b16 %v68
    %v402 = vunpack.c.h.b16 %v68
    %v403 = vunpack.c.l.b16 %v69
    %v404 = vunpack.c.h.b16 %v69
    %v405 = vunpack.c.l.b16 %v70
    %v406 = vunpack.c.h.b16 %v70
    %v407 = vunpack.c.l.b16 %v71
    %v408 = vunpack.c.h.b16 %v71
    %v409 = vunpack.c.l.b16 %v72
    %v410 = vunpack.c.h.b16 %v72
    %v411 = vunpack.c.l.b16 %v73
    %v412 = vunpack.c.h.b16 %v73
    %v413 = vunpack.c.l.b16 %v74
    %v414 = vunpack.c.h.b16 %v74
    %v415 = vunpack.c.l.b16 %v75
    %v416 = vunpack.c.h.b16 %v75
    %v417 = vunpack.c.l.b16 %v76
    %v418 = vunpack.c.h.b16 %v76
    %v419 = vunpack.c.l.b16 %v77
    %v420 = vunpack.c.h.b16 %v77
    %v421 = vunpack.c.l.b16 %v78
    %v422 = vunpack.c.h.b16 %v78
    %v423 = vunpack.c.l.b16 %v79
    %v424 = vunpack.c.h.b16 %v79
    %v425 = vunpack.c.l.b16 %v80
    %v426 = vunpack.c.h.b16 %v80
    %v427 = vunpack.c.l.b16 %v81
    %v428 = vunpack.c.h.b16 %v81
    %v429 = vunpack.c.l.b16 %v82
    %v430 = vunpack.c.h.b16 %v82
    %v431 = vunpack.c.l.b16 %v83
    %v432 = vunpack.c.h.b16 %v83
    %v433 = vunpack.c.l.b16 %v84
    %v434 = vunpack.c.h.b16 %v84
    %v435 = vunpack.c.l.b16 %v85
    %v436 = vunpack.c.h.b16 %v85
    %v437 = vunpack.c.l.b16 %v86
    %v438 = vunpack.c.h.b16 %v86
    %v439 = vunpack.c.l.b16 %v87
    %v440 = vunpack.c.h.b16 %v87
    %v441 = vunpack.c.l.b16 %v88
    %v442 = vunpack.c.h.b16 %v88
    %v443 = vunpack.c.l.b16 %v89
    %v444 = vunpack.c.h.b16 %v89
    %v445 = vunpack.c.l.b16 %v90
    %v446 = vunpack.c.h.b16 %v90
    %v447 = vunpack.c.l.b16 %v91
    %v448 = vunpack.c.h.b16 %v91
    %v449 = vunpack.c.l.b16 %v92
    %v450 = vunpack.c.h.b16 %v92
    %v451 = vunpack.c.l.b16 %v93
    %v452 = vunpack.c.h.b16 %v93
    %v453 = vunpack.c.l.b16 %v94
    %v454 = vunpack.c.h.b16 %v94
    %v455 = vunpack.c.l.b16 %v95
    %v456 = vunpack.c.h.b16 %v95
    %v457 = vunpack.c.l.b16 %v96
    %v458 = vunpack.c.h.b16 %v96
    %v459 = vunpack.c.l.b16 %v97
    %v460 = vunpack.c.h.b16 %v97
    %v461 = vunpack.c.l.b16 %v98
    %v462 = vunpack.c.h.b16 %v98
    %v463 = vunpack.c.l.b16 %v99
    %v464 = vunpack.c.h.b16 %v99
    %v465 = vunpack.c.l.b16 %v100
    %v466 = vunpack.c.h.b16 %v100
    %v467 = vunpack.c.l.b16 %v101
    %v468 = vunpack.c.h.b16 %v101
    %v469 = vunpack.c.l.b16 %v102
    %v470 = vunpack.c.h.b16 %v102
    %v471 = vunpack.c.l.b16 %v103
    %v472 = vunpack.c.h.b16 %v103
    %v473 = vunpack.c.l.b16 %v104
    %v474 = vunpack.c.h.b16 %v104
    %v475 = vunpack.c.l.b16 %v105
    %v476 = vunpack.c.h.b16 %v105
    %v477 = vunpack.c.l.b16 %v106
    %v478 = vunpack.c.h.b16 %v106
    %v479 = vunpack.c.l.b16 %v107
    %v480 = vunpack.c.h.b16 %v107
    %v481 = vunpack.c.l.b16 %v108
    %v482 = vunpack.c.h.b16 %v108
    %v483 = vunpack.c.l.b16 %v109
    %v484 = vunpack.c.h.b16 %v109
    %v485 = vunpack.c.l.b16 %v110
    %v486 = vunpack.c.h.b16 %v110
    %v487 = vunpack.c.l.b16 %v111
    %v488 = vunpack.c.h.b16 %v111
    %v489 = vunpack.c.l.b16 %v112
    %v490 = vunpack.c.h.b16 %v112
    %v491 = vunpack.c.l.b16 %v113
    %v492 = vunpack.c.h.b16 %v113
    %v493 = vunpack.c.l.b16 %v114
    %v494 = vunpack.c.h.b16 %v114
    %v495 = vunpack.c.l.b16 %v115
    %v496 = vunpack.c.h.b16 %v115
    %v497 = vunpack.c.l.b16 %v116
    %v498 = vunpack.c.h.b16 %v116
    %v499 = vunpack.c.l.b16 %v117
    %v500 = vunpack.c.h.b16 %v117
    %v501 = vunpack.c.l.b16 %v118
    %v502 = vunpack.c.h.b16 %v118
    %v503 = vunpack.c.l.b16 %v119
    %v504 = vunpack.c.h.b16 %v119
    %v505 = vunpack.c.l.b16 %v120
    %v506 = vunpack.c.h.b16 %v120
    %v507 = vunpack.c.l.b16 %v121
    %v508 = vunpack.c.h.b16 %v121
    %v509 = vunpack.c.l.b16 %v122
    %v510 = vunpack.c.h.b16 %v122
    %v511 = vunpack.c.l.b16 %v123
    %v512 = vunpack.c.h.b16 %v123
    %v513 = vunpack.c.l.b16 %v124
    %v514 = vunpack.c.h.b16 %v124
    %v515 = vunpack.c.l.b16 %v125
    %v516 = vunpack.c.h.b16 %v125
    %v517 = vunpack.c.l.b16 %v126
    %v518 = vunpack.c.h.b16 %v126
    %v519 = vunpack.c.l.b16 %v127
    %v520 = vunpack.c.h.b16 %v127
    %v521 = vunpack.c.l.b16 %v128
    %v522 = vunpack.c.h.b16 %v128
    %v523 = vunpack.c.l.b16 %v129
    %v524 = vunpack.c.h.b16 %v129
    %v525 = vunpack.c.l.b16 %v130
    %v526 = vunpack.c.h.b16 %v130
    %v527 = vunpack.c.l.b16 %v131
    %v528 = vunpack.c.h.b16 %v131
    %v529 = vunpack.c.l.b16 %v132
    %v530 = vunpack.c.h.b16 %v132
    %v531 = vunpack.c.l.b16 %v133
    %v532 = vunpack.c.h.b16 %v133
    %v533 = vunpack.c.l.b16 %v134
    %v534 = vunpack.c.h.b16 %v134
    %v535 = vunpack.c.l.b16 %v135
    %v536 = vunpack.c.h.b16 %v135
    %v537 = vunpack.c.l.b16 %v136
    %v538 = vunpack.c.h.b16 %v136
    %v539 = vunpack.c.l.b16 %v137
    %v540 = vunpack.c.h.b16 %v137
    %v541 = vunpack.c.l.b16 %v138
    %v542 = vunpack.c.h.b16 %v138
    %v543 = vunpack.c.l.b16 %v139
    %v544 = vunpack.c.h.b16 %v139
    %v545 = vunpack.c.l.b16 %v140
    %v546 = vunpack.c.h.b16 %v140
    %v547 = vunpack.c.l.b16 %v141
    %v548 = vunpack.c.h.b16 %v141
    %v549 = vunpack.c.l.b16 %v142
    %v550 = vunpack.c.h.b16 %v142
    %v551 = vunpack.c.l.b16 %v143
    %v552 = vunpack.c.h.b16 %v143
    %v553 = vunpack.c.l.b16 %v144
    %v554 = vunpack.c.h.b16 %v144
    %v555 = vunpack.c.l.b16 %v145
    %v556 = vunpack.c.h.b16 %v145
    %v557 = vunpack.c.l.b16 %v146
    %v558 = vunpack.c.h.b16 %v146
    %v559 = vunpack.c.l.b16 %v147
    %v560 = vunpack.c.h.b16 %v147
    %v561 = vunpack.c.l.b16 %v148
    %v562 = vunpack.c.h.b16 %v148
    %v563 = vunpack.c.l.b16 %v149
    %v564 = vunpack.c.h.b16 %v149
    %v565 = vunpack.c.l.b16 %v150
    %v566 = vunpack.c.h.b16 %v150
    %v567 = vunpack.c.l.b16 %v151
    %v568 = vunpack.c.h.b16 %v151
    %v569 = vunpack.c.l.b16 %v152
    %v570 = vunpack.c.h.b16 %v152
    %v571 = vunpack.c.l.b16 %v153
    %v572 = vunpack.c.h.b16 %v153
    %v573 = vunpack.c.l.b16 %v154
    %v574 = vunpack.c.h.b16 %v154
    %v575 = vunpack.c.l.b16 %v155
    %v576 = vunpack.c.h.b16 %v155
    %v577 = vunpack.c.l.b16 %v156
    %v578 = vunpack.c.h.b16 %v156
    %v579 = vunpack.c.l.b16 %v157
    %v580 = vunpack.c.h.b16 %v157
    %v581 = vunpack.c.l.b16 %v158
    %v582 = vunpack.c.h.b16 %v158
    %v583 = vunpack.c.l.b16 %v159
    %v584 = vunpack.c.h.b16 %v159
    %v585 = vunpack.c.l.b16 %v160
    %v586 = vunpack.c.h.b16 %v160
    %v587 = vunpack.c.l.b16 %v161
    %v588 = vunpack.c.h.b16 %v161
    %v589 = vunpack.c.l.b16 %v162
    %v590 = vunpack.c.h.b16 %v162
    %v591 = vunpack.c.l.b16 %v163
    %v592 = vunpack.c.h.b16 %v163
    %v593 = vunpack.c.l.b16 %v164
    %v594 = vunpack.c.h.b16 %v164
    %v595 = vunpack.c.l.b16 %v165
    %v596 = vunpack.c.h.b16 %v165
    %v597 = vunpack.c.l.b16 %v166
    %v598 = vunpack.c.h.b16 %v166
    %v599 = vunpack.c.l.b16 %v167
    %v600 = vunpack.c.h.b16 %v167
    %v601 = vunpack.c.l.b16 %v168
    %v602 = vunpack.c.h.b16 %v168
    %v603 = vunpack.c.l.b16 %v169
    %v604 = vunpack.c.h.b16 %v169
    %v605 = vunpack.c.l.b16 %v170
    %v606 = vunpack.c.h.b16 %v170
    %v607 = vpack.c.b16 %v353, %v351
    %v608 = vpack.c.b16 %v354, %v352
    %v609 = vpack.c.b16 %v357, %v355
    %v610 = vpack.c.b16 %v358, %v356
    %v611 = vpack.c.b16 %v361, %v359
    %v612 = vpack.c.b16 %v362, %v360
    %v613 = vpack.c.b16 %v365, %v363
    %v614 = vpack.c.b16 %v366, %v364
    %v615 = vpack.c.b16 %v369, %v367
    %v616 = vpack.c.b16 %v370, %v368
    %v617 = vpack.c.b16 %v373, %v371
    %v618 = vpack.c.b16 %v374, %v372
    %v619 = vpack.c.b16 %v377, %v375
    %v620 = vpack.c.b16 %v378, %v376
    %v621 = vpack.c.b16 %v381, %v379
    %v622 = vpack.c.b16 %v382, %v380
    %v623 = vpack.c.b16 %v385, %v383
    %v624 = vpack.c.b16 %v386, %v384
    %v625 = vpack.c.b16 %v389, %v387
    %v626 = vpack.c.b16 %v390, %v388
    %v627 = vpack.c.b16 %v393, %v391
    %v628 = vpack.c.b16 %v394, %v392
    %v629 = vpack.c.b16 %v397, %v395
    %v630 = vpack.c.b16 %v398, %v396
    %v631 = vpack.c.b16 %v401, %v399
    %v632 = vpack.c.b16 %v402, %v400
    %v633 = vpack.c.b16 %v405, %v403
    %v634 = vpack.c.b16 %v406, %v404
    %v635 = vpack.c.b16 %v409, %v407
    %v636 = vpack.c.b16 %v410, %v408
    %v637 = vpack.c.b16 %v413, %v411
    %v638 = vpack.c.b16 %v414, %v412
    %v639 = vpack.c.b16 %v417, %v415
    %v640 = vpack.c.b16 %v418, %v416
    %v641 = vpack.c.b16 %v421, %v419
    %v642 = vpack.c.b16 %v422, %v420
    %v643 = vpack.c.b16 %v425, %v423
    %v644 = vpack.c.b16 %v426, %v424
    %v645 = vpack.c.b16 %v429, %v427
    %v646 = vpack.c.b16 %v430, %v428
    %v647 = vpack.c.b16 %v433, %v431
    %v648 = vpack.c.b16 %v434, %v432
    %v649 = vpack.c.b16 %v437, %v435
    %v650 = vpack.c.b16 %v438, %v436
    %v651 = vpack.c.b16 %v441, %v439
    %v652 = vpack.c.b16 %v442, %v440
    %v653 = vpack.c.b16 %v445, %v443
    %v654 = vpack.c.b16 %v446, %v444
    %v655 = vpack.c.b16 %v449, %v447
    %v656 = vpack.c.b16 %v450, %v448
    %v657 = vpack.c.b16 %v453, %v451
    %v658 = vpack.c.b16 %v454, %v452
    %v659 = vpack.c.b16 %v457, %v455
    %v660 = vpack.c.b16 %v458, %v456
    %v661 = vpack.c.b16 %v461, %v459
    %v662 = vpack.c.b16 %v462, %v460
    %v663 = vpack.c.b16 %v465, %v463
    %v664 = vpack.c.b16 %v466, %v464
    %v665 = vpack.c.b16 %v469, %v467
    %v666 = vpack.c.b16 %v470, %v468
    %v667 = vpack.c.b16 %v473, %v471
    %v668 = vpack.c.b16 %v474, %v472
    %v669 = vpack.c.b16 %v477, %v475
    %v670 = vpack.c.b16 %v478, %v476
    %v671 = vpack.c.b16 %v481, %v479
    %v672 = vpack.c.b16 %v482, %v480
    %v673 = vpack.c.b16 %v485, %v483
    %v674 = vpack.c.b16 %v486, %v484
    %v675 = vpack.c.b16 %v489, %v487
    %v676 = vpack.c.b16 %v490, %v488
    %v677 = vpack.c.b16 %v493, %v491
    %v678 = vpack.c.b16 %v494, %v492
    %v679 = vpack.c.b16 %v497, %v495
    %v680 = vpack.c.b16 %v498, %v496
    %v681 = vpack.c.b16 %v501, %v499
    %v682 = vpack.c.b16 %v502, %v500
    %v683 = vpack.c.b16 %v505, %v503
    %v684 = vpack.c.b16 %v506, %v504
    %v685 = vpack.c.b16 %v509, %v507
    %v686 = vpack.c.b16 %v510, %v508
    %v687 = vpack.c.b16 %v513, %v511
    %v688 = vpack.c.b16 %v514, %v512
    %v689 = vpack.c.b16 %v517, %v515
    %v690 = vpack.c.b16 %v518, %v516
    %v691 = vpack.c.b16 %v521, %v519
    %v692 = vpack.c.b16 %v522, %v520
    %v693 = vpack.c.b16 %v525, %v523
    %v694 = vpack.c.b16 %v526, %v524
    %v695 = vpack.c.b16 %v529, %v527
    %v696 = vpack.c.b16 %v530, %v528
    %v697 = vpack.c.b16 %v533, %v531
    %v698 = vpack.c.b16 %v534, %v532
    %v699 = vpack.c.b16 %v537, %v535
    %v700 = vpack.c.b16 %v538, %v536
    %v701 = vpack.c.b16 %v541, %v539
    %v702 = vpack.c.b16 %v542, %v540
    %v703 = vpack.c.b16 %v545, %v543
    %v704 = vpack.c.b16 %v546, %v544
    %v705 = vpack.c.b16 %v549, %v547
    %v706 = vpack.c.b16 %v550, %v548
    %v707 = vpack.c.b16 %v553, %v551
    %v708 = vpack.c.b16 %v554, %v552
    %v709 = vpack.c.b16 %v557, %v555
    %v710 = vpack.c.b16 %v558, %v556
    %v711 = vpack.c.b16 %v561, %v559
    %v712 = vpack.c.b16 %v562, %v560
    %v713 = vpack.c.b16 %v565, %v563
    %v714 = vpack.c.b16 %v566, %v564
    %v715 = vpack.c.b16 %v569, %v567
    %v716 = vpack.c.b16 %v570, %v568
    %v717 = vpack.c.b16 %v573, %v571
    %v718 = vpack.c.b16 %v574, %v572
    %v719 = vpack.c.b16 %v577, %v575
    %v720 = vpack.c.b16 %v578, %v576
    %v721 = vpack.c.b16 %v581, %v579
    %v722 = vpack.c.b16 %v582, %v580
    %v723 = vpack.c.b16 %v585, %v583
    %v724 = vpack.c.b16 %v586, %v584
    %v725 = vpack.c.b16 %v589, %v587
    %v726 = vpack.c.b16 %v590, %v588
    %v727 = vpack.c.b16 %v593, %v591
    %v728 = vpack.c.b16 %v594, %v592
    %v729 = vpack.c.b16 %v597, %v595
    %v730 = vpack.c.b16 %v598, %v596
    %v731 = vpack.c.b16 %v601, %v599
    %v732 = vpack.c.b16 %v602, %v600
    %v733 = vpack.c.b16 %v605, %v603
    %v734 = vpack.c.b16 %v606, %v604
    %863 = vmatprep.subr.bf16.mxu0 %v608
    %864 = vmatpush1.bf16.msra.mxu0 %v607
    %865 = vmatprep.subr.bf16.mxu0 %v610
    %866 = vmatpush1.bf16.msra.mxu0 %v609
    %867 = vmatprep.subr.bf16.mxu0 %v612
    %868 = vmatpush1.bf16.msra.mxu0 %v611
    %869 = vmatprep.subr.bf16.mxu0 %v614
    %870 = vmatpush1.bf16.msra.mxu0 %v613
    %871 = vmatprep.subr.bf16.mxu0 %v616
    %872 = vmatpush1.bf16.msra.mxu0 %v615
    %873 = vmatprep.subr.bf16.mxu0 %v618
    %874 = vmatpush1.bf16.msra.mxu0 %v617
    %875 = vmatprep.subr.bf16.mxu0 %v620
    %876 = vmatpush1.bf16.msra.mxu0 %v619
    %877 = vmatprep.subr.bf16.mxu0 %v622
    %878 = vmatpush1.bf16.msra.mxu0 %v621
    %879 = vmatprep.subr.bf16.mxu0 %v624
    %880 = vmatpush1.bf16.msra.mxu0 %v623
    %881 = vmatprep.subr.bf16.mxu0 %v626
    %882 = vmatpush1.bf16.msra.mxu0 %v625
    %883 = vmatprep.subr.bf16.mxu0 %v628
    %884 = vmatpush1.bf16.msra.mxu0 %v627
    %885 = vmatprep.subr.bf16.mxu0 %v630
    %886 = vmatpush1.bf16.msra.mxu0 %v629
    %887 = vmatprep.subr.bf16.mxu0 %v632
    %888 = vmatpush1.bf16.msra.mxu0 %v631
    %889 = vmatprep.subr.bf16.mxu0 %v634
    %890 = vmatpush1.bf16.msra.mxu0 %v633
    %891 = vmatprep.subr.bf16.mxu0 %v636
    %892 = vmatpush1.bf16.msra.mxu0 %v635
    %893 = vmatprep.subr.bf16.mxu0 %v638
    %894 = vmatpush1.bf16.msra.mxu0 %v637
    %895 = vmatprep.mubr.bf16.mxu0 %v208
    %896 = vmatmul.mubr.bf16.gmra.mrb[0].mxu0 %v207
    %v897 = vpop.f32.mrb[0].mxu0
    %v898 = vadd.f32 %v176, %v897
    %v899 = vpop.f32.mrb[0].mxu0
    %v900 = vadd.f32 %v180, %v899
    %v901 = vpop.f32.mrb[0].mxu0
    %v902 = vadd.f32 %v176, %v901
    %v903 = vpop.f32.mrb[0].mxu0
    %v904 = vadd.f32 %v180, %v903
    %905 = vdwg.mxu0
    %906 = vmatprep.subr.bf16.mxu0 %v640
    %907 = vmatpush1.bf16.msra.mxu0 %v639
    %908 = vmatprep.subr.bf16.mxu0 %v642
    %909 = vmatpush1.bf16.msra.mxu0 %v641
    %910 = vmatprep.subr.bf16.mxu0 %v644
    %911 = vmatpush1.bf16.msra.mxu0 %v643
    %912 = vmatprep.subr.bf16.mxu0 %v646
    %913 = vmatpush1.bf16.msra.mxu0 %v645
    %914 = vmatprep.subr.bf16.mxu0 %v648
    %915 = vmatpush1.bf16.msra.mxu0 %v647
    %916 = vmatprep.subr.bf16.mxu0 %v650
    %917 = vmatpush1.bf16.msra.mxu0 %v649
    %918 = vmatprep.subr.bf16.mxu0 %v652
    %919 = vmatpush1.bf16.msra.mxu0 %v651
    %920 = vmatprep.subr.bf16.mxu0 %v654
    %921 = vmatpush1.bf16.msra.mxu0 %v653
    %922 = vmatprep.subr.bf16.mxu0 %v656
    %923 = vmatpush1.bf16.msra.mxu0 %v655
    %924 = vmatprep.subr.bf16.mxu0 %v658
    %925 = vmatpush1.bf16.msra.mxu0 %v657
    %926 = vmatprep.subr.bf16.mxu0 %v660
    %927 = vmatpush1.bf16.msra.mxu0 %v659
    %928 = vmatprep.subr.bf16.mxu0 %v662
    %929 = vmatpush1.bf16.msra.mxu0 %v661
    %930 = vmatprep.subr.bf16.mxu0 %v664
    %931 = vmatpush1.bf16.msra.mxu0 %v663
    %932 = vmatprep.subr.bf16.mxu0 %v666
    %933 = vmatpush1.bf16.msra.mxu0 %v665
    %934 = vmatprep.subr.bf16.mxu0 %v668
    %935 = vmatpush1.bf16.msra.mxu0 %v667
    %936 = vmatprep.subr.bf16.mxu0 %v670
    %937 = vmatpush1.bf16.msra.mxu0 %v669
    %938 = vmatprep.mubr.bf16.mxu0 %v210
    %939 = vmatmul.mubr.bf16.gmra.mrb[0].mxu0 %v209
    %v940 = vpop.f32.mrb[0].mxu0
    %v941 = vadd.f32 %v898, %v940
    %v942 = vpop.f32.mrb[0].mxu0
    %v943 = vadd.f32 %v900, %v942
    %v944 = vpop.f32.mrb[0].mxu0
    %v945 = vadd.f32 %v902, %v944
    %v946 = vpop.f32.mrb[0].mxu0
    %v947 = vadd.f32 %v904, %v946
    %948 = vdwg.mxu0
    %949 = vmatprep.subr.bf16.mxu0 %v672
    %950 = vmatpush1.bf16.msra.mxu0 %v671
    %951 = vmatprep.subr.bf16.mxu0 %v674
    %952 = vmatpush1.bf16.msra.mxu0 %v673
    %953 = vmatprep.subr.bf16.mxu0 %v676
    %954 = vmatpush1.bf16.msra.mxu0 %v675
    %955 = vmatprep.subr.bf16.mxu0 %v678
    %956 = vmatpush1.bf16.msra.mxu0 %v677
    %957 = vmatprep.subr.bf16.mxu0 %v680
    %958 = vmatpush1.bf16.msra.mxu0 %v679
    %959 = vmatprep.subr.bf16.mxu0 %v682
    %960 = vmatpush1.bf16.msra.mxu0 %v681
    %961 = vmatprep.subr.bf16.mxu0 %v684
    %962 = vmatpush1.bf16.msra.mxu0 %v683
    %963 = vmatprep.subr.bf16.mxu0 %v686
    %964 = vmatpush1.bf16.msra.mxu0 %v685
    %965 = vmatprep.subr.bf16.mxu0 %v688
    %966 = vmatpush1.bf16.msra.mxu0 %v687
    %967 = vmatprep.subr.bf16.mxu0 %v690
    %968 = vmatpush1.bf16.msra.mxu0 %v689
    %969 = vmatprep.subr.bf16.mxu0 %v692
    %970 = vmatpush1.bf16.msra.mxu0 %v691
    %971 = vmatprep.subr.bf16.mxu0 %v694
    %972 = vmatpush1.bf16.msra.mxu0 %v693
    %973 = vmatprep.subr.bf16.mxu0 %v696
    %974 = vmatpush1.bf16.msra.mxu0 %v695
    %975 = vmatprep.subr.bf16.mxu0 %v698
    %976 = vmatpush1.bf16.msra.mxu0 %v697
    %977 = vmatprep.subr.bf16.mxu0 %v700
    %978 = vmatpush1.bf16.msra.mxu0 %v699
    %979 = vmatprep.subr.bf16.mxu0 %v702
    %980 = vmatpush1.bf16.msra.mxu0 %v701
    %981 = vmatprep.mubr.bf16.mxu0 %v212
    %982 = vmatmul.mubr.bf16.gmra.mrb[0].mxu0 %v211
    %v983 = vpop.f32.mrb[0].mxu0
    %v984 = vadd.f32 %v941, %v983
    %v985 = vpop.f32.mrb[0].mxu0
    %v986 = vadd.f32 %v943, %v985
    %v987 = vpop.f32.mrb[0].mxu0
    %v988 = vadd.f32 %v945, %v987
    %v989 = vpop.f32.mrb[0].mxu0
    %v990 = vadd.f32 %v947, %v989
    %991 = vdwg.mxu0
    %992 = vmatprep.subr.bf16.mxu0 %v704
    %993 = vmatpush1.bf16.msra.mxu0 %v703
    %994 = vmatprep.subr.bf16.mxu0 %v706
    %995 = vmatpush1.bf16.msra.mxu0 %v705
    %996 = vmatprep.subr.bf16.mxu0 %v708
    %997 = vmatpush1.bf16.msra.mxu0 %v707
    %998 = vmatprep.subr.bf16.mxu0 %v710
    %999 = vmatpush1.bf16.msra.mxu0 %v709
    %1000 = vmatprep.subr.bf16.mxu0 %v712
    %1001 = vmatpush1.bf16.msra.mxu0 %v711
    %1002 = vmatprep.subr.bf16.mxu0 %v714
    %1003 = vmatpush1.bf16.msra.mxu0 %v713
    %1004 = vmatprep.subr.bf16.mxu0 %v716
    %1005 = vmatpush1.bf16.msra.mxu0 %v715
    %1006 = vmatprep.subr.bf16.mxu0 %v718
    %1007 = vmatpush1.bf16.msra.mxu0 %v717
    %1008 = vmatprep.subr.bf16.mxu0 %v720
    %1009 = vmatpush1.bf16.msra.mxu0 %v719
    %1010 = vmatprep.subr.bf16.mxu0 %v722
    %1011 = vmatpush1.bf16.msra.mxu0 %v721
    %1012 = vmatprep.subr.bf16.mxu0 %v724
    %1013 = vmatpush1.bf16.msra.mxu0 %v723
    %1014 = vmatprep.subr.bf16.mxu0 %v726
    %1015 = vmatpush1.bf16.msra.mxu0 %v725
    %1016 = vmatprep.subr.bf16.mxu0 %v728
    %1017 = vmatpush1.bf16.msra.mxu0 %v727
    %1018 = vmatprep.subr.bf16.mxu0 %v730
    %1019 = vmatpush1.bf16.msra.mxu0 %v729
    %1020 = vmatprep.subr.bf16.mxu0 %v732
    %1021 = vmatpush1.bf16.msra.mxu0 %v731
    %1022 = vmatprep.subr.bf16.mxu0 %v734
    %1023 = vmatpush1.bf16.msra.mxu0 %v733
    %1024 = vmatprep.mubr.bf16.mxu0 %v214
    %1025 = vmatmul.mubr.bf16.gmra.mrb[0].mxu0 %v213
    %v1026 = vpop.f32.mrb[0].mxu0
    %v1027 = vadd.f32 %v984, %v1026
    %v1028 = vpop.f32.mrb[0].mxu0
    %v1029 = vadd.f32 %v986, %v1028
    %v1030 = vpop.f32.mrb[0].mxu0
    %v1031 = vadd.f32 %v988, %v1030
    %v1032 = vpop.f32.mrb[0].mxu0
    %v1033 = vadd.f32 %v990, %v1032
    %1034 = vdwg.mxu0
    %v1035 = vmax.f32 %v1027, 0.0
    %v1036 = vmax.f32 %v1029, 0.0
    %v1037 = vmax.f32 %v1031, 0.0
    %v1038 = vmax.f32 %v1033, 0.0
    %v1039 = vpack.c.bf16 %v1037, %v1035
    %v1040 = vpack.c.bf16 %v1038, %v1036
    %v1041 = vld [vmem:[%s3] sm:$0xf]
    %v1042 = vld [vmem:[%s3 + $0x4] sm:$0xf]
    %v1043 = vld [vmem:[%s3 + $0x8] sm:$0xf]
    %v1044 = vld [vmem:[%s3 + $0xc] sm:$0xf]
    %v1045 = vld [vmem:[%s3 + $0x10] sm:$0xf]
    %v1046 = vld [vmem:[%s3 + $0x14] sm:$0xf]
    %v1047 = vld [vmem:[%s3 + $0x18] sm:$0xf]
    %v1048 = vld [vmem:[%s3 + $0x1c] sm:$0xf]
    %v1049 = vld [vmem:[%s3 + $0x20] sm:$0xf]
    %v1050 = vld [vmem:[%s3 + $0x24] sm:$0xf]
    %v1051 = vld [vmem:[%s3 + $0x28] sm:$0xf]
    %v1052 = vld [vmem:[%s3 + $0x2c] sm:$0xf]
    %v1053 = vld [vmem:[%s3 + $0x30] sm:$0xf]
    %v1054 = vld [vmem:[%s3 + $0x34] sm:$0xf]
    %v1055 = vld [vmem:[%s3 + $0x38] sm:$0xf]
    %v1056 = vld [vmem:[%s3 + $0x3c] sm:$0xf]
    %v1057 = vld [vmem:[%s3 + $0x40] sm:$0xf]
    %v1058 = vld [vmem:[%s3 + $0x44] sm:$0xf]
    %v1059 = vld [vmem:[%s3 + $0x48] sm:$0xf]
    %v1060 = vld [vmem:[%s3 + $0x4c] sm:$0xf]
    %v1061 = vld [vmem:[%s3 + $0x50] sm:$0xf]
    %v1062 = vld [vmem:[%s3 + $0x54] sm:$0xf]
    %v1063 = vld [vmem:[%s3 + $0x58] sm:$0xf]
    %v1064 = vld [vmem:[%s3 + $0x5c] sm:$0xf]
    %v1065 = vld [vmem:[%s3 + $0x60] sm:$0xf]
    %v1066 = vld [vmem:[%s3 + $0x64] sm:$0xf]
    %v1067 = vld [vmem:[%s3 + $0x68] sm:$0xf]
    %v1068 = vld [vmem:[%s3 + $0x6c] sm:$0xf]
    %v1069 = vld [vmem:[%s3 + $0x70] sm:$0xf]
    %v1070 = vld [vmem:[%s3 + $0x74] sm:$0xf]
    %v1071 = vld [vmem:[%s3 + $0x78] sm:$0xf]
    %v1072 = vld [vmem:[%s3 + $0x7c] sm:$0xf]
    %v1073 = vld [vmem:[%s4] sm:$0x1]
    %v1075 = vlaneseq
    %v1076 = vshrl.u32 %v1075, 7
    %v1077 = vsub.s32 0, %v1076
    %v1078 = vrot.slane %v1073, %v1077
    %v1112 = vunpack.c.l.b16 %v1041
    %v1113 = vunpack.c.l.b16 %v1042
    %v1114 = vunpack.c.l.b16 %v1043
    %v1115 = vunpack.c.l.b16 %v1044
    %v1116 = vunpack.c.l.b16 %v1045
    %v1117 = vunpack.c.l.b16 %v1046
    %v1118 = vunpack.c.l.b16 %v1047
    %v1119 = vunpack.c.l.b16 %v1048
    %v1120 = vunpack.c.l.b16 %v1049
    %v1121 = vunpack.c.l.b16 %v1050
    %v1122 = vunpack.c.l.b16 %v1051
    %v1123 = vunpack.c.l.b16 %v1052
    %v1124 = vunpack.c.l.b16 %v1053
    %v1125 = vunpack.c.l.b16 %v1054
    %v1126 = vunpack.c.l.b16 %v1055
    %v1127 = vunpack.c.l.b16 %v1056
    %v1128 = vunpack.c.l.b16 %v1057
    %v1129 = vunpack.c.l.b16 %v1058
    %v1130 = vunpack.c.l.b16 %v1059
    %v1131 = vunpack.c.l.b16 %v1060
    %v1132 = vunpack.c.l.b16 %v1061
    %v1133 = vunpack.c.l.b16 %v1062
    %v1134 = vunpack.c.l.b16 %v1063
    %v1135 = vunpack.c.l.b16 %v1064
    %v1136 = vunpack.c.l.b16 %v1065
    %v1137 = vunpack.c.l.b16 %v1066
    %v1138 = vunpack.c.l.b16 %v1067
    %v1139 = vunpack.c.l.b16 %v1068
    %v1140 = vunpack.c.l.b16 %v1069
    %v1141 = vunpack.c.l.b16 %v1070
    %v1142 = vunpack.c.l.b16 %v1071
    %v1143 = vunpack.c.l.b16 %v1072
    %v1144 = vpack.c.b16 %v1113, %v1112
    %v1145 = vpack.c.b16 %v1115, %v1114
    %v1146 = vpack.c.b16 %v1117, %v1116
    %v1147 = vpack.c.b16 %v1119, %v1118
    %v1148 = vpack.c.b16 %v1121, %v1120
    %v1149 = vpack.c.b16 %v1123, %v1122
    %v1150 = vpack.c.b16 %v1125, %v1124
    %v1151 = vpack.c.b16 %v1127, %v1126
    %v1152 = vpack.c.b16 %v1129, %v1128
    %v1153 = vpack.c.b16 %v1131, %v1130
    %v1154 = vpack.c.b16 %v1133, %v1132
    %v1155 = vpack.c.b16 %v1135, %v1134
    %v1156 = vpack.c.b16 %v1137, %v1136
    %v1157 = vpack.c.b16 %v1139, %v1138
    %v1158 = vpack.c.b16 %v1141, %v1140
    %v1159 = vpack.c.b16 %v1143, %v1142
    %1176 = vmatprep.subr.bf16.mxu0 0
    %1177 = vmatpush1.bf16.msra.mxu0 %v1144
    %1178 = vmatprep.subr.bf16.mxu0 0
    %1179 = vmatpush1.bf16.msra.mxu0 %v1145
    %1180 = vmatprep.subr.bf16.mxu0 0
    %1181 = vmatpush1.bf16.msra.mxu0 %v1146
    %1182 = vmatprep.subr.bf16.mxu0 0
    %1183 = vmatpush1.bf16.msra.mxu0 %v1147
    %1184 = vmatprep.subr.bf16.mxu0 0
    %1185 = vmatpush1.bf16.msra.mxu0 %v1148
    %1186 = vmatprep.subr.bf16.mxu0 0
    %1187 = vmatpush1.bf16.msra.mxu0 %v1149
    %1188 = vmatprep.subr.bf16.mxu0 0
    %1189 = vmatpush1.bf16.msra.mxu0 %v1150
    %1190 = vmatprep.subr.bf16.mxu0 0
    %1191 = vmatpush1.bf16.msra.mxu0 %v1151
    %1192 = vmatprep.subr.bf16.mxu0 0
    %1193 = vmatpush1.bf16.msra.mxu0 %v1152
    %1194 = vmatprep.subr.bf16.mxu0 0
    %1195 = vmatpush1.bf16.msra.mxu0 %v1153
    %1196 = vmatprep.subr.bf16.mxu0 0
    %1197 = vmatpush1.bf16.msra.mxu0 %v1154
    %1198 = vmatprep.subr.bf16.mxu0 0
    %1199 = vmatpush1.bf16.msra.mxu0 %v1155
    %1200 = vmatprep.subr.bf16.mxu0 0
    %1201 = vmatpush1.bf16.msra.mxu0 %v1156
    %1202 = vmatprep.subr.bf16.mxu0 0
    %1203 = vmatpush1.bf16.msra.mxu0 %v1157
    %1204 = vmatprep.subr.bf16.mxu0 0
    %1205 = vmatpush1.bf16.msra.mxu0 %v1158
    %1206 = vmatprep.subr.bf16.mxu0 0
    %1207 = vmatpush1.bf16.msra.mxu0 %v1159
    %1208 = vmatprep.mubr.bf16.mxu0 %v1040
    %1209 = vmatmul.mubr.bf16.gmra.mrb[0].mxu0 %v1039
    %v1210 = vpop.f32.mrb[0].mxu0
    %v1211 = vadd.f32 %v1078, %v1210
    %v1212 = vpop.f32.mrb[0].mxu0
    %v1213 = vpop.f32.mrb[0].mxu0
    %v1214 = vadd.f32 %v1078, %v1213
    %v1215 = vpop.f32.mrb[0].mxu0
    %1216 = vdwg.mxu0
    %1217 = vst [vmem:[%s5] sm:$0xff] %v1211
    %1218 = vst [vmem:[%s5 + $0x8] sm:$0xff] %v1214
    // Predicated region
    $region26: #{ensemble_vae_forward.1} parent=1 // pred_check
      _
    $region27: #{ensemble_vae_forward.1} parent=1 // pred_check_branch
      %1220 = sbr.rel (0) target = $region29
    $region28: #{ensemble_vae_forward.1} parent=1 // pred_region
      _
    $region29: #{ensemble_vae_forward.1} parent=1 // pred_fallthru
      _
    // Predicated region
    $region30: #{ensemble_vae_forward.1} parent=1 // pred_check
      _
    $region31: #{ensemble_vae_forward.1} parent=1 // pred_check_branch
      %1222 = sbr.rel (0) target = $region33
    $region32: #{ensemble_vae_forward.1} parent=1 // pred_region
      _
    $region33: #{ensemble_vae_forward.1} parent=1 // pred_fallthru
      _
    %1223 = vsyncpa [#allocation3], 1

</llo_original>
